<compile_context>
chip_gen: v7x
topology: tpu7x:2x2x1
jax: 0.10.0
libtpu: 0.0.40
codegen_flags: <defaults>
</compile_context>

<pallas_src>
import numpy as np
import jax
import jax.numpy as jnp
from jax.experimental import pallas as pl
from jax.experimental.pallas import tpu as pltpu


# ---------------- graph construction (deterministic parameter setup, numpy glue) ----
def k_adjacency(A, k, with_self=False, self_factor=1):
    I = np.eye(len(A), dtype=A.dtype)
    if k == 0:
        return I
    Ak = np.minimum(np.linalg.matrix_power(A + I, k), 1) \
       - np.minimum(np.linalg.matrix_power(A + I, k - 1), 1)
    if with_self:
        Ak = Ak + self_factor * I
    return Ak


def normalize_adjacency_matrix(A):
    node_degrees = A.sum(-1)
    degs_inv_sqrt = np.power(node_degrees, -0.5)
    norm_degs_matrix = np.eye(len(node_degrees)) * degs_inv_sqrt
    return (norm_degs_matrix @ A @ norm_degs_matrix).astype(np.float32)


# ---------------- Pallas kernel ----------------
def msgcn_fused_kernel(x_ref, m_ref, b_ref, o_ref):
    # x_ref: (RB, C*V)  f32   rows = (n, t) pairs, cols = (c, u)
    # m_ref: (C*V, O*V) f32   fused graph-agg + 1x1-conv + BN-scale operator
    # b_ref: (1, O*V)   f32   folded conv-bias + BN shift (broadcast over rows)
    # o_ref: (RB, O*V)  f32   lane-dense output (O*V is a multiple of 128)
    y = jnp.dot(x_ref[...], m_ref[...], preferred_element_type=jnp.float32)
    y = y + b_ref[...]                                     # f32 epilogue
    o_ref[...] = jnp.maximum(y, 0.0).astype(o_ref.dtype)   # ReLU


# ---------------- one-time parameter folding (NOT in the per-forward path) ----------
def make_fused_operator(A, W, conv_b, bn_gamma, bn_beta, bn_mean, bn_var,
                        C, V, eps=1e-5):
    """Fold eval-mode BN + 1x1 conv + graph aggregation into (M, bias_ov).

    M:       (C*V, O*V)  so that out2d = relu(x2d @ M + bias_ov)
    bias_ov: (1,  O*V)   bias_ov[0, o*V + v] = ((conv_b - mean) * scale + beta)[o]
    """
    SV = A.shape[0]
    S = SV // V
    O = W.shape[0]

    eff_scale = (bn_gamma / jnp.sqrt(bn_var + eps)).astype(jnp.float32)        # (O,)
    eff_bias = ((conv_b - bn_mean) * eff_scale + bn_beta).astype(jnp.float32)  # (O,)

    W_fold = (eff_scale[:, None] * W.astype(jnp.float32)).reshape(O, S, C)
    A_r = A.astype(jnp.float32).reshape(S, V, V)
    M = jnp.einsum('osc,svu->cuov', W_fold, A_r,
                   precision=jax.lax.Precision.HIGHEST).reshape(C * V, O * V)
    bias_ov = jnp.repeat(eff_bias, V).reshape(1, O * V)
    return M.astype(jnp.float32), bias_ov.astype(jnp.float32)


# ---------------- forward wrapper (hot path) ----------------
def multiscale_graphconv(x, M, bias_ov, out_channels, nchw_output=True):
    """x: (N, C, T, V); M/bias_ov from make_fused_operator.

    nchw_output=True  -> (N, O, T, V)  (matches the PyTorch module)
    nchw_output=False -> (N, T, O, V)  kernel-native layout, skips the extra
                         post-kernel HBM round trip (use when the consumer can
                         take this layout / fuse the transpose).
    """
    N, C, T, V = x.shape
    O = out_channels
    Kdim, Ncol = C * V, O * V
    assert M.shape == (Kdim, Ncol) and bias_ov.shape == (1, Ncol)

    # (N, C, T, V) -> (N*T, C*V).  Tiny relayout required by the fused operator
    # layout; XLA fuses it into the surrounding graph.
    x2d = jnp.transpose(x, (0, 2, 1, 3)).reshape(N * T, Kdim)
    rows = N * T

    # Row-block selection: one grid step unless each block carries >= 256 rows of
    # MXU work (only then does a 2-way "parallel" split across v7x's 2 TCs pay
    # for the per-step overhead).
    if rows % 2 == 0 and (rows // 2) % 256 == 0:
        rb = rows // 2
    else:
        rb = rows
    grid = (rows // rb,)

    # Advisory cost so XLA overlaps the surrounding reshape/transpose with the call.
    cost = pl.CostEstimate(
        flops=2 * rows * Kdim * Ncol,
        transcendentals=0,
        bytes_accessed=4 * (rows * Kdim + Kdim * Ncol + Ncol + rows * Ncol),
    )

    # Constant-operand specs: single-buffer them once the weights are non-trivial
    # (their index maps are constant, so double-buffering only wastes VMEM).
    big_weights = (Kdim * Ncol * 4) > (4 << 20)
    const_kwargs = dict(pipeline_mode=pl.Buffered(1)) if (big_weights and grid[0] > 1) else {}

    out2d = pl.pallas_call(
        msgcn_fused_kernel,
        out_shape=jax.ShapeDtypeStruct((rows, Ncol), jnp.float32),
        grid=grid,
        in_specs=[
            pl.BlockSpec((rb, Kdim), lambda i: (i, 0)),
            pl.BlockSpec((Kdim, Ncol), lambda i: (0, 0), **const_kwargs),  # weights
            pl.BlockSpec((1, Ncol), lambda i: (0, 0), **const_kwargs),     # bias
        ],
        out_specs=pl.BlockSpec((rb, Ncol), lambda i: (i, 0)),
        compiler_params=pltpu.CompilerParams(
            dimension_semantics=("parallel",)),
        cost_estimate=cost,
    )(x2d, M, bias_ov)

    out = out2d.reshape(N, T, O, V)          # kernel-native layout
    if nchw_output:
        out = jnp.transpose(out, (0, 2, 1, 3))   # PyTorch (N, O, T, V)
    return out


# ---------------- pure-JAX reference (mirrors the PyTorch forward) ----------------
def reference(x, A, W, conv_b, gamma, beta, mean, var, S, eps=1e-5):
    N, C, T, V = x.shape
    hp = jax.lax.Precision.HIGHEST
    support = jnp.einsum('vu,nctu->nctv', A, x, precision=hp)      # (N, C, T, S*V)
    support = support.reshape(N, C, T, S, V)
    support = jnp.transpose(support, (0, 3, 1, 2, 4)).reshape(N, S * C, T, V)
    y = jnp.einsum('ok,nktv->notv', W, support, precision=hp) \
        + conv_b[None, :, None, None]
    y = (y - mean[None, :, None, None]) / jnp.sqrt(var[None, :, None, None] + eps) \
        * gamma[None, :, None, None] + beta[None, :, None, None]
    return jnp.maximum(y, 0.0)


if __name__ == "__main__":
    key = jax.random.PRNGKey(0)
    N, C, T, V = 2, 4, 16, 16         # batch, in_channels, time, vertices
    S, O = 3, 32                      # num_scales, out_channels

    # Synthetic binary adjacency: ring graph over V nodes (no self loops).
    A_binary = np.zeros((V, V), dtype=np.float32)
    for i in range(V):
        A_binary[i, (i + 1) % V] = 1.0
        A_binary[i, (i - 1) % V] = 1.0

    # disentangled_agg=True path of the module.
    A_powers = np.concatenate(
        [normalize_adjacency_matrix(k_adjacency(A_binary, k, with_self=True))
         for k in range(S)], axis=0)                              # (S*V, V)

    k1, k2, k3, k4 = jax.random.split(key, 4)
    x = jax.random.normal(k1, (N, C, T, V), dtype=jnp.float32)
    # use_mask=True: learnable residual mask, uniform(-1e-6, 1e-6)
    A_res = jax.random.uniform(k2, (S * V, V), minval=-1e-6, maxval=1e-6,
                               dtype=jnp.float32)
    A = jnp.asarray(A_powers, dtype=jnp.float32) + A_res

    # MLP = Conv2d(S*C -> O, 1x1) + BatchNorm2d(O) + ReLU (dropout=0 -> no layer)
    W = jax.random.normal(k3, (O, S * C), dtype=jnp.float32) / np.sqrt(S * C)
    conv_b = 0.01 * jax.random.normal(k4, (O,), dtype=jnp.float32)
    bn_gamma = jnp.ones((O,), jnp.float32)
    bn_beta = jnp.zeros((O,), jnp.float32)
    bn_mean = jnp.zeros((O,), jnp.float32)
    bn_var = jnp.ones((O,), jnp.float32)

    # One-time parameter folding (outside the per-forward hot path).
    M, bias_ov = make_fused_operator(A, W, conv_b, bn_gamma, bn_beta,
                                     bn_mean, bn_var, C, V)
    M = jax.block_until_ready(M)

    out = multiscale_graphconv(x, M, bias_ov, O, nchw_output=True)
    out = jax.block_until_ready(out)

    ref = reference(x, A, W, conv_b, bn_gamma, bn_beta, bn_mean, bn_var, S)
    # f32 operands on all sides -> tight tolerance restored.
    np.testing.assert_allclose(np.asarray(out), np.asarray(ref),
                               rtol=1e-4, atol=1e-4)
    print("KERNEL_OK")
</pallas_src>

<mosaic_0001>
module attributes {stable_mosaic.version = 11 : i64} {
  func.func @msgcn_fused_kernel(%arg0: i32, %arg1: memref<32x64xf32, #tpu.memory_space<vmem>>, %arg2: memref<64x512xf32, #tpu.memory_space<vmem>>, %arg3: memref<1x512xf32, #tpu.memory_space<vmem>>, %arg4: memref<32x512xf32, #tpu.memory_space<vmem>>) attributes {dimension_semantics = [#tpu.dimension_semantics<parallel>], iteration_bounds = array<i64: 1>, scalar_prefetch = 0 : i64, scratch_operands = 0 : i64, tpu.core_type = #tpu.core_type<tc>, window_params = [{transform_indices = @transform_0, window_bounds = array<i64: 32, 64>}, {pipeline_mode = #tpu.pipeline_mode<synchronous>, transform_indices = @transform_1, window_bounds = array<i64: 64, 512>}, {pipeline_mode = #tpu.pipeline_mode<synchronous>, transform_indices = @transform_2, window_bounds = array<i64: 1, 512>}, {transform_indices = @transform_3, window_bounds = array<i64: 32, 512>}]} {
    %c0 = arith.constant 0 : index
    %c0_0 = arith.constant 0 : index
    %0 = vector.load %arg1[%c0, %c0_0] : memref<32x64xf32, #tpu.memory_space<vmem>>, vector<32x64xf32>
    %c0_1 = arith.constant 0 : index
    %c0_2 = arith.constant 0 : index
    %1 = vector.load %arg2[%c0_1, %c0_2] : memref<64x512xf32, #tpu.memory_space<vmem>>, vector<64x512xf32>
    %cst = arith.constant dense<0.000000e+00> : vector<32x512xf32>
    %2 = tpu.matmul %0, %1, %cst {dimension_numbers = #tpu.dot_dimension_numbers<[1], [0], [0], [1], [0, 0, 1, 1], [], []>} : vector<32x64xf32>, vector<64x512xf32>, vector<32x512xf32> -> vector<32x512xf32>
    %c0_3 = arith.constant 0 : index
    %c0_4 = arith.constant 0 : index
    %3 = vector.load %arg3[%c0_3, %c0_4] : memref<1x512xf32, #tpu.memory_space<vmem>>, vector<1x512xf32>
    %4 = vector.broadcast %3 : vector<1x512xf32> to vector<32x512xf32>
    %5 = arith.addf %2, %4 : vector<32x512xf32>
    %cst_5 = arith.constant 0.000000e+00 : f32
    %6 = vector.broadcast %cst_5 : f32 to vector<32x512xf32>
    %7 = arith.maximumf %5, %6 : vector<32x512xf32>
    %c0_6 = arith.constant 0 : index
    %c0_7 = arith.constant 0 : index
    %8 = vector.load %arg4[%c0_6, %c0_7] : memref<32x512xf32, #tpu.memory_space<vmem>>, vector<32x512xf32>
    tpu.vector_store %arg4[%c0_6, %c0_7], %7 {strides = array<i32>} : memref<32x512xf32, #tpu.memory_space<vmem>>, vector<32x512xf32>,
    return
  }
  func.func @transform_0(%arg0: i32) -> (i32, i32) {
    %c0_i32 = arith.constant 0 : i32
    %c0_i32_0 = arith.constant 0 : i32
    return %arg0, %c0_i32 : i32, i32
  }
  func.func @transform_1(%arg0: i32) -> (i32, i32) {
    %c0_i32 = arith.constant 0 : i32
    %c0_i32_0 = arith.constant 0 : i32
    %c0_i32_1 = arith.constant 0 : i32
    return %c0_i32, %c0_i32_0 : i32, i32
  }
  func.func @transform_2(%arg0: i32) -> (i32, i32) {
    %c0_i32 = arith.constant 0 : i32
    %c0_i32_0 = arith.constant 0 : i32
    %c0_i32_1 = arith.constant 0 : i32
    return %c0_i32, %c0_i32_0 : i32, i32
  }
  func.func @transform_3(%arg0: i32) -> (i32, i32) {
    %c0_i32 = arith.constant 0 : i32
    %c0_i32_0 = arith.constant 0 : i32
    return %arg0, %c0_i32 : i32, i32
  }
}

</mosaic_0001>

<llo_original>
// kernel: tpu_custom_call.1
$region0: #{tpu_custom_call.1}
  #allocation0 [shape = 'u32[]', space=smem, size = 0x4, offset = 0x4, fixed_abs, tag = 'smem constant byte address 0x4 - core index']
  #allocation1 [shape = 'u32[144,128]{1,0:T(1,128)}', space=vmem, size = 0x12000, scoped, tag = 'internal scratch']
  %s0 = inlined_call_operand.hbm [shape: f32[32,64], index: 0, kind: input, shape index: {}]
  %s1 = inlined_call_operand.hbm [shape: f32[64,512], index: 1, kind: input, shape index: {}]
  %s2 = inlined_call_operand.vmem [shape: f32[1,512], index: 2, kind: input, shape index: {}]
  %s3 = inlined_call_operand.hbm [shape: f32[32,512], index: 3, kind: output, shape index: {}]
  %s4 = sld [smem:[#allocation0]]
  $region30: #{tpu_custom_call.1} parent=0
    _
  %s6 = ssub.s32 1, %s4
  %s7 = scalar_select 0, %s6, %s4
  $region1: #{tpu_custom_call.1} parent=0
    #allocation2 [shape = 'u8[16384]{0}', space=vmem, size = 0x4000, scoped, tag = 'input window, operand 0, single buffered']
    #allocation3 [shape = 's32[1]{0}', space=sflag, size = 0x4, scoped, tag = 'scoped memory for tpu_custom_call.1']
    #allocation4 [shape = 's32[1]{0}', space=sflag, size = 0x4, scoped, tag = 'scoped memory for tpu_custom_call.1']
    #allocation5 [shape = 'u8[131072]{0}', space=vmem, size = 0x20000, scoped, tag = 'input window, operand 1, single buffered']
    #allocation6 [shape = 's32[1]{0}', space=sflag, size = 0x4, scoped, tag = 'scoped memory for tpu_custom_call.1']
    #allocation7 [shape = 'u8[65536]{0}', space=vmem, size = 0x10000, scoped, tag = 'output window, operand 0, single buffered']
    %8 = vsyncpa [#allocation3], 0
    %9 = vsyncpa [#allocation6], 0
    %10 = vsyncpa [#allocation4], 0
    // Predicated region
    $region2: #{tpu_custom_call.1} parent=1 // pred_check
      _
    $region3: #{tpu_custom_call.1} parent=1 // pred_check_branch
      %12 = sbr.rel (0) target = $region5
    $region4: #{tpu_custom_call.1} parent=1 // pred_region
      %s14 = ssub.s32 512, 512
      %15 = vsyncadd [#allocation3], %s14
      %s16 = sshll.u32 [#allocation2], 4
      %s17 = int_to_ptr.vmem [resolvable:$true] %s16
      %22 = dma.hbm_to_vmem [thread:$0]  %s0, 512, %s17, [#allocation3], 128, 128, 8
    $region5: #{tpu_custom_call.1} parent=1 // pred_fallthru
      _
    // Predicated region
    $region6: #{tpu_custom_call.1} parent=1 // pred_check
      _
    $region7: #{tpu_custom_call.1} parent=1 // pred_check_branch
      %24 = sbr.rel (0) target = $region9
    $region8: #{tpu_custom_call.1} parent=1 // pred_region
      %s26 = ssub.s32 4096, 4096
      %27 = vsyncadd [#allocation6], %s26
      %s28 = sshll.u32 [#allocation5], 4
      %s29 = int_to_ptr.vmem [resolvable:$true] %s28
      %34 = dma.hbm_to_vmem [thread:$0]  %s1, 4096, %s29, [#allocation6], 512, 512, 32
    $region9: #{tpu_custom_call.1} parent=1 // pred_fallthru
      _
    // Predicated region
    $region10: #{tpu_custom_call.1} parent=1 // pred_check
      _
    $region11: #{tpu_custom_call.1} parent=1 // pred_check_branch
      %36 = sbr.rel (0) target = $region13
    $region12: #{tpu_custom_call.1} parent=1 // pred_region
      _
    $region13: #{tpu_custom_call.1} parent=1 // pred_fallthru
      _
    // Predicated region
    $region14: #{tpu_custom_call.1} parent=1 // pred_check
      _
    $region15: #{tpu_custom_call.1} parent=1 // pred_check_branch
      %38 = sbr.rel (0) target = $region17
    $region16: #{tpu_custom_call.1} parent=1 // pred_region
      %39 = dma.done [#allocation3], 512
    $region17: #{tpu_custom_call.1} parent=1 // pred_fallthru
      _
    // Predicated region
    $region18: #{tpu_custom_call.1} parent=1 // pred_check
      _
    $region19: #{tpu_custom_call.1} parent=1 // pred_check_branch
      %41 = sbr.rel (0) target = $region21
    $region20: #{tpu_custom_call.1} parent=1 // pred_region
      %42 = dma.done [#allocation6], 4096
    $region21: #{tpu_custom_call.1} parent=1 // pred_fallthru
      _
    %v43 = vld [vmem:[#allocation2] sm:$0xff]
    %v44 = vld [vmem:[#allocation2 + $0x8] sm:$0xff]
    %v45 = vld [vmem:[#allocation2 + $0x10] sm:$0xff]
    %v46 = vld [vmem:[#allocation2 + $0x18] sm:$0xff]
    %v47 = vld [vmem:[#allocation5] sm:$0xff]
    %v48 = vld [vmem:[#allocation5 + $0x8] sm:$0xff]
    %v49 = vld [vmem:[#allocation5 + $0x10] sm:$0xff]
    %v50 = vld [vmem:[#allocation5 + $0x18] sm:$0xff]
    %v51 = vld [vmem:[#allocation5 + $0x20] sm:$0xff]
    %v52 = vld [vmem:[#allocation5 + $0x28] sm:$0xff]
    %v53 = vld [vmem:[#allocation5 + $0x30] sm:$0xff]
    %v54 = vld [vmem:[#allocation5 + $0x38] sm:$0xff]
    %v55 = vld [vmem:[#allocation5 + $0x40] sm:$0xff]
    %v56 = vld [vmem:[#allocation5 + $0x48] sm:$0xff]
    %v57 = vld [vmem:[#allocation5 + $0x50] sm:$0xff]
    %v58 = vld [vmem:[#allocation5 + $0x58] sm:$0xff]
    %v59 = vld [vmem:[#allocation5 + $0x60] sm:$0xff]
    %v60 = vld [vmem:[#allocation5 + $0x68] sm:$0xff]
    %v61 = vld [vmem:[#allocation5 + $0x70] sm:$0xff]
    %v62 = vld [vmem:[#allocation5 + $0x78] sm:$0xff]
    %v63 = vld [vmem:[#allocation5 + $0x80] sm:$0xff]
    %v64 = vld [vmem:[#allocation5 + $0x88] sm:$0xff]
    %v65 = vld [vmem:[#allocation5 + $0x90] sm:$0xff]
    %v66 = vld [vmem:[#allocation5 + $0x98] sm:$0xff]
    %v67 = vld [vmem:[#allocation5 + $0xa0] sm:$0xff]
    %v68 = vld [vmem:[#allocation5 + $0xa8] sm:$0xff]
    %v69 = vld [vmem:[#allocation5 + $0xb0] sm:$0xff]
    %v70 = vld [vmem:[#allocation5 + $0xb8] sm:$0xff]
    %v71 = vld [vmem:[#allocation5 + $0xc0] sm:$0xff]
    %v72 = vld [vmem:[#allocation5 + $0xc8] sm:$0xff]
    %v73 = vld [vmem:[#allocation5 + $0xd0] sm:$0xff]
    %v74 = vld [vmem:[#allocation5 + $0xd8] sm:$0xff]
    %v75 = vld [vmem:[#allocation5 + $0xe0] sm:$0xff]
    %v76 = vld [vmem:[#allocation5 + $0xe8] sm:$0xff]
    %v77 = vld [vmem:[#allocation5 + $0xf0] sm:$0xff]
    %v78 = vld [vmem:[#allocation5 + $0xf8] sm:$0xff]
    %v79 = vld [vmem:[%s2] sm:$0xf]
    %v81 = vlaneseq
    %v82 = vshrl.u32 %v81, 7
    %v83 = vsub.s32 0, %v82
    %v84 = vrot.slane %v79, %v83
    %v85 = vlaneseq
    %v86 = vshrl.u32 %v85, 7
    %v87 = vsub.s32 1, %v86
    %v88 = vrot.slane %v79, %v87
    %v89 = vlaneseq
    %v90 = vshrl.u32 %v89, 7
    %v91 = vsub.s32 2, %v90
    %v92 = vrot.slane %v79, %v91
    %v93 = vlaneseq
    %v94 = vshrl.u32 %v93, 7
    %v95 = vsub.s32 3, %v94
    %v96 = vrot.slane %v79, %v95
    %vm101 = vcmask 523264
    %v103 = vsel %vm101, %v43, 0
    %v106 = vsel %vm101, %v44, 0
    %v109 = vsel %vm101, %v45, 0
    %v112 = vsel %vm101, %v46, 0
    %114 = vmatprep.subr.mxu0 %v48
    %115 = vmatpush1.msra.mxu0 %v47
    %116 = vmatprep.subr.mxu0 %v52
    %117 = vmatpush1.msra.mxu0 %v51
    %118 = vmatprep.subr.mxu0 %v56
    %119 = vmatpush1.msra.mxu0 %v55
    %120 = vmatprep.subr.mxu0 %v60
    %121 = vmatpush1.msra.mxu0 %v59
    %122 = vmatprep.subr.mxu0 %v64
    %123 = vmatpush1.msra.mxu0 %v63
    %124 = vmatprep.subr.mxu0 %v68
    %125 = vmatpush1.msra.mxu0 %v67
    %126 = vmatprep.subr.mxu0 %v72
    %127 = vmatpush1.msra.mxu0 %v71
    %128 = vmatprep.subr.mxu0 %v76
    %129 = vmatpush1.msra.mxu0 %v75
    %130 = vmatprep.subr.mxu0 0.0
    %131 = vmatpush1.msra.mxu0 0.0
    %132 = vmatprep.subr.mxu0 0.0
    %133 = vmatpush1.msra.mxu0 0.0
    %134 = vmatprep.subr.mxu0 0.0
    %135 = vmatpush1.msra.mxu0 0.0
    %136 = vmatprep.subr.mxu0 0.0
    %137 = vmatpush1.msra.mxu0 0.0
    %138 = vmatprep.subr.mxu0 0.0
    %139 = vmatpush1.msra.mxu0 0.0
    %140 = vmatprep.subr.mxu0 0.0
    %141 = vmatpush1.msra.mxu0 0.0
    %142 = vmatprep.subr.mxu0 0.0
    %143 = vmatpush1.msra.mxu0 0.0
    %144 = vmatprep.subr.mxu0 0.0
    %145 = vmatpush1.msra.mxu0 0.0
    %146 = vmatprep.subr.mxu0 0.0
    %147 = vmatpush1.msra.mxu0 0.0
    %148 = vmatprep.subr.mxu0 0.0
    %149 = vmatpush1.msra.mxu0 0.0
    %150 = vmatprep.subr.mxu0 0.0
    %151 = vmatpush1.msra.mxu0 0.0
    %152 = vmatprep.subr.mxu0 0.0
    %153 = vmatpush1.msra.mxu0 0.0
    %154 = vmatprep.subr.mxu0 0.0
    %155 = vmatpush1.msra.mxu0 0.0
    %156 = vmatprep.subr.mxu0 0.0
    %157 = vmatpush1.msra.mxu0 0.0
    %158 = vmatprep.subr.mxu0 0.0
    %159 = vmatpush1.msra.mxu0 0.0
    %160 = vmatprep.subr.mxu0 0.0
    %161 = vmatpush1.msra.mxu0 0.0
    %162 = vmatprep.subr.mxu0 0.0
    %163 = vmatpush1.msra.mxu0 0.0
    %164 = vmatprep.subr.mxu0 0.0
    %165 = vmatpush1.msra.mxu0 0.0
    %166 = vmatprep.subr.mxu0 0.0
    %167 = vmatpush1.msra.mxu0 0.0
    %168 = vmatprep.subr.mxu0 0.0
    %169 = vmatpush1.msra.mxu0 0.0
    %170 = vmatprep.subr.mxu0 0.0
    %171 = vmatpush1.msra.mxu0 0.0
    %172 = vmatprep.subr.mxu0 0.0
    %173 = vmatpush1.msra.mxu0 0.0
    %174 = vmatprep.subr.mxu0 0.0
    %175 = vmatpush1.msra.mxu0 0.0
    %176 = vmatprep.subr.mxu0 0.0
    %177 = vmatpush1.msra.mxu0 0.0
    %178 = vmatprep.mubr.f32.mxu0 0.0
    %179 = vmatmul.mubr.f32.gmra.mrb[0].mxu0 %v103
    %v180 = vpop.f32.mrb[0].mxu0
    %v181 = vadd.f32 %v84, %v180
    %v182 = vpop.f32.mrb[0].mxu0
    %v183 = vadd.f32 %v88, %v182
    %184 = vmatprep.mubr.f32.mxu0 0.0
    %185 = vmatmul.mubr.f32.gmra.mrb[0].mxu0 %v106
    %v186 = vpop.f32.mrb[0].mxu0
    %v187 = vadd.f32 %v84, %v186
    %v188 = vpop.f32.mrb[0].mxu0
    %v189 = vadd.f32 %v88, %v188
    %190 = vmatprep.mubr.f32.mxu0 0.0
    %191 = vmatmul.mubr.f32.gmra.mrb[0].mxu0 %v109
    %v192 = vpop.f32.mrb[0].mxu0
    %v193 = vadd.f32 %v84, %v192
    %v194 = vpop.f32.mrb[0].mxu0
    %v195 = vadd.f32 %v88, %v194
    %196 = vmatprep.mubr.f32.mxu0 0.0
    %197 = vmatmul.mubr.f32.gmra.mrb[0].mxu0 %v112
    %v198 = vpop.f32.mrb[0].mxu0
    %v199 = vadd.f32 %v84, %v198
    %v200 = vpop.f32.mrb[0].mxu0
    %v201 = vadd.f32 %v88, %v200
    %202 = vdwg.mxu0
    %203 = vmatprep.subr.mxu0 %v50
    %204 = vmatpush1.msra.mxu0 %v49
    %205 = vmatprep.subr.mxu0 %v54
    %206 = vmatpush1.msra.mxu0 %v53
    %207 = vmatprep.subr.mxu0 %v58
    %208 = vmatpush1.msra.mxu0 %v57
    %209 = vmatprep.subr.mxu0 %v62
    %210 = vmatpush1.msra.mxu0 %v61
    %211 = vmatprep.subr.mxu0 %v66
    %212 = vmatpush1.msra.mxu0 %v65
    %213 = vmatprep.subr.mxu0 %v70
    %214 = vmatpush1.msra.mxu0 %v69
    %215 = vmatprep.subr.mxu0 %v74
    %216 = vmatpush1.msra.mxu0 %v73
    %217 = vmatprep.subr.mxu0 %v78
    %218 = vmatpush1.msra.mxu0 %v77
    %219 = vmatprep.subr.mxu0 0.0
    %220 = vmatpush1.msra.mxu0 0.0
    %221 = vmatprep.subr.mxu0 0.0
    %222 = vmatpush1.msra.mxu0 0.0
    %223 = vmatprep.subr.mxu0 0.0
    %224 = vmatpush1.msra.mxu0 0.0
    %225 = vmatprep.subr.mxu0 0.0
    %226 = vmatpush1.msra.mxu0 0.0
    %227 = vmatprep.subr.mxu0 0.0
    %228 = vmatpush1.msra.mxu0 0.0
    %229 = vmatprep.subr.mxu0 0.0
    %230 = vmatpush1.msra.mxu0 0.0
    %231 = vmatprep.subr.mxu0 0.0
    %232 = vmatpush1.msra.mxu0 0.0
    %233 = vmatprep.subr.mxu0 0.0
    %234 = vmatpush1.msra.mxu0 0.0
    %235 = vmatprep.subr.mxu0 0.0
    %236 = vmatpush1.msra.mxu0 0.0
    %237 = vmatprep.subr.mxu0 0.0
    %238 = vmatpush1.msra.mxu0 0.0
    %239 = vmatprep.subr.mxu0 0.0
    %240 = vmatpush1.msra.mxu0 0.0
    %241 = vmatprep.subr.mxu0 0.0
    %242 = vmatpush1.msra.mxu0 0.0
    %243 = vmatprep.subr.mxu0 0.0
    %244 = vmatpush1.msra.mxu0 0.0
    %245 = vmatprep.subr.mxu0 0.0
    %246 = vmatpush1.msra.mxu0 0.0
    %247 = vmatprep.subr.mxu0 0.0
    %248 = vmatpush1.msra.mxu0 0.0
    %249 = vmatprep.subr.mxu0 0.0
    %250 = vmatpush1.msra.mxu0 0.0
    %251 = vmatprep.subr.mxu0 0.0
    %252 = vmatpush1.msra.mxu0 0.0
    %253 = vmatprep.subr.mxu0 0.0
    %254 = vmatpush1.msra.mxu0 0.0
    %255 = vmatprep.subr.mxu0 0.0
    %256 = vmatpush1.msra.mxu0 0.0
    %257 = vmatprep.subr.mxu0 0.0
    %258 = vmatpush1.msra.mxu0 0.0
    %259 = vmatprep.subr.mxu0 0.0
    %260 = vmatpush1.msra.mxu0 0.0
    %261 = vmatprep.subr.mxu0 0.0
    %262 = vmatpush1.msra.mxu0 0.0
    %263 = vmatprep.subr.mxu0 0.0
    %264 = vmatpush1.msra.mxu0 0.0
    %265 = vmatprep.subr.mxu0 0.0
    %266 = vmatpush1.msra.mxu0 0.0
    %267 = vmatprep.mubr.f32.mxu0 0.0
    %268 = vmatmul.mubr.f32.gmra.mrb[0].mxu0 %v103
    %v269 = vpop.f32.mrb[0].mxu0
    %v270 = vadd.f32 %v92, %v269
    %v271 = vpop.f32.mrb[0].mxu0
    %v272 = vadd.f32 %v96, %v271
    %273 = vmatprep.mubr.f32.mxu0 0.0
    %274 = vmatmul.mubr.f32.gmra.mrb[0].mxu0 %v106
    %v275 = vpop.f32.mrb[0].mxu0
    %v276 = vadd.f32 %v92, %v275
    %v277 = vpop.f32.mrb[0].mxu0
    %v278 = vadd.f32 %v96, %v277
    %279 = vmatprep.mubr.f32.mxu0 0.0
    %280 = vmatmul.mubr.f32.gmra.mrb[0].mxu0 %v109
    %v281 = vpop.f32.mrb[0].mxu0
    %v282 = vadd.f32 %v92, %v281
    %v283 = vpop.f32.mrb[0].mxu0
    %v284 = vadd.f32 %v96, %v283
    %285 = vmatprep.mubr.f32.mxu0 0.0
    %286 = vmatmul.mubr.f32.gmra.mrb[0].mxu0 %v112
    %v287 = vpop.f32.mrb[0].mxu0
    %v288 = vadd.f32 %v92, %v287
    %v289 = vpop.f32.mrb[0].mxu0
    %v290 = vadd.f32 %v96, %v289
    %291 = vdwg.mxu0
    %v292 = vmax.f32 %v181, 0.0
    %v293 = vmax.f32 %v183, 0.0
    %v294 = vmax.f32 %v270, 0.0
    %v295 = vmax.f32 %v272, 0.0
    %v296 = vmax.f32 %v187, 0.0
    %v297 = vmax.f32 %v189, 0.0
    %v298 = vmax.f32 %v276, 0.0
    %v299 = vmax.f32 %v278, 0.0
    %v300 = vmax.f32 %v193, 0.0
    %v301 = vmax.f32 %v195, 0.0
    %v302 = vmax.f32 %v282, 0.0
    %v303 = vmax.f32 %v284, 0.0
    %v304 = vmax.f32 %v199, 0.0
    %v305 = vmax.f32 %v201, 0.0
    %v306 = vmax.f32 %v288, 0.0
    %v307 = vmax.f32 %v290, 0.0
    %308 = vst [vmem:[#allocation7] sm:$0xff] %v292
    %309 = vst [vmem:[#allocation7 + $0x8] sm:$0xff] %v293
    %310 = vst [vmem:[#allocation7 + $0x10] sm:$0xff] %v294
    %311 = vst [vmem:[#allocation7 + $0x18] sm:$0xff] %v295
    %312 = vst [vmem:[#allocation7 + $0x20] sm:$0xff] %v296
    %313 = vst [vmem:[#allocation7 + $0x28] sm:$0xff] %v297
    %314 = vst [vmem:[#allocation7 + $0x30] sm:$0xff] %v298
    %315 = vst [vmem:[#allocation7 + $0x38] sm:$0xff] %v299
    %316 = vst [vmem:[#allocation7 + $0x40] sm:$0xff] %v300
    %317 = vst [vmem:[#allocation7 + $0x48] sm:$0xff] %v301
    %318 = vst [vmem:[#allocation7 + $0x50] sm:$0xff] %v302
    %319 = vst [vmem:[#allocation7 + $0x58] sm:$0xff] %v303
    %320 = vst [vmem:[#allocation7 + $0x60] sm:$0xff] %v304
    %321 = vst [vmem:[#allocation7 + $0x68] sm:$0xff] %v305
    %322 = vst [vmem:[#allocation7 + $0x70] sm:$0xff] %v306
    %323 = vst [vmem:[#allocation7 + $0x78] sm:$0xff] %v307
    // Predicated region
    $region22: #{tpu_custom_call.1} parent=1 // pred_check
      _
    $region23: #{tpu_custom_call.1} parent=1 // pred_check_branch
      %325 = sbr.rel (0) target = $region25
    $region24: #{tpu_custom_call.1} parent=1 // pred_region
      %s327 = ssub.s32 2048, 2048
      %328 = vsyncadd [#allocation4], %s327
      %s329 = sshll.u32 [#allocation7], 4
      %s330 = int_to_ptr.vmem [resolvable:$true] %s329
      %335 = dma.vmem_to_hbm [thread:$0]  %s330, 2048, %s3, [#allocation4], 512, 512, 32
    $region25: #{tpu_custom_call.1} parent=1 // pred_fallthru
      _
    // Predicated region
    $region26: #{tpu_custom_call.1} parent=1 // pred_check
      _
    $region27: #{tpu_custom_call.1} parent=1 // pred_check_branch
      %337 = sbr.rel (0) target = $region29
    $region28: #{tpu_custom_call.1} parent=1 // pred_region
      %338 = dma.done [#allocation4], 2048
    $region29: #{tpu_custom_call.1} parent=1 // pred_fallthru
      _
    %339 = vsyncpa [#allocation3], 1
    %340 = vsyncpa [#allocation6], 1
    %341 = vsyncpa [#allocation4], 1

</llo_original>
